<compile_context>
chip_gen: v7x
topology: tpu7x:2x2x1
jax: 0.10.0
libtpu: 0.0.40
codegen_flags: <defaults>
</compile_context>

<pallas_src>
import jax
import jax.numpy as jnp
from jax import lax
from jax.experimental import pallas as pl
from jax.experimental.pallas import tpu as pltpu


def _blur_kernel(x_ref, w_ref, o_ref):
    # x_ref : (1, CT, H, W) input block in VMEM
    # w_ref : (3, 3)        kernel weights in SMEM (scalar reads)
    # o_ref : (1, CT, H, W) output block in VMEM
    _, CT, H, W = x_ref.shape

    x = x_ref[0, :, :, :].astype(jnp.float32)           # (CT, H, W)

    # Row / column ids for the zero-padding boundary masks (VPU selects).
    row = lax.broadcasted_iota(jnp.int32, (CT, H, W), 1)
    col = lax.broadcasted_iota(jnp.int32, (CT, H, W), 2)

    # Hoisted scalar weight reads (SMEM -> scalar regs), one per tap.
    w = [[w_ref[ky, kx] for kx in range(3)] for ky in range(3)]

    # Vertical neighbours: sublane rotate on the XLU + top/bottom zero mask.
    #   x_up[c, i, j]   = x[c, i-1, j]  (0 at i == 0)
    #   x_down[c, i, j] = x[c, i+1, j]  (0 at i == H-1)
    x_up = jnp.where(row >= 1, pltpu.roll(x, shift=1, axis=1), 0.0)
    x_down = jnp.where(row <= H - 2, pltpu.roll(x, shift=H - 1, axis=1), 0.0)

    def shift_cols(v, dx):
        # v[c, i, j + dx] with zero padding at the left/right image border.
        if dx == 0:
            return v
        rolled = pltpu.roll(v, shift=(-dx) % W, axis=2)   # XLU lane rotate
        if dx < 0:
            return jnp.where(col >= 1, rolled, 0.0)       # v[..., j-1]
        return jnp.where(col <= W - 2, rolled, 0.0)       # v[..., j+1]

    # Cross-correlation, matching F.conv2d(padding=1) semantics.  The center
    # tap seeds the accumulator; accumulation stays in f32.
    slabs = {-1: x_up, 0: x, 1: x_down}
    acc = w[1][1] * x
    for ky in range(3):
        for kx in range(3):
            if ky == 1 and kx == 1:
                continue
            acc = acc + w[ky][kx] * shift_cols(slabs[ky - 1], kx - 1)

    o_ref[0, :, :, :] = acc.astype(o_ref.dtype)


def gaussian_blur(x, weight):
    """x: (N, 6, H, W), weight: (3, 3) -> (N, 6, H, W) depthwise 3x3, pad=1."""
    N, C, H, W = x.shape
    assert C == 6, "GaussianBlur.forward expects exactly 6 channels"
    C_TILE = 2                      # channels are independent -> halo-free tiling
    assert C % C_TILE == 0
    return pl.pallas_call(
        _blur_kernel,
        out_shape=jax.ShapeDtypeStruct((N, C, H, W), x.dtype),
        grid=(N, C // C_TILE),
        in_specs=[
            pl.BlockSpec((1, C_TILE, H, W), lambda n, c: (n, c, 0, 0)),
            pl.BlockSpec(memory_space=pltpu.SMEM),   # (3,3) weights, scalar reads
        ],
        out_specs=pl.BlockSpec((1, C_TILE, H, W), lambda n, c: (n, c, 0, 0)),
        compiler_params=pltpu.CompilerParams(
            dimension_semantics=("parallel", "parallel"),
        ),
    )(x, weight)


def _reference(x, weight):
    # Pure-JAX reference: depthwise 3x3 conv with zero padding (same weight
    # applied to each of the six channels, matching the module's forward).
    N, C, H, W = x.shape
    xp = jnp.pad(x, ((0, 0), (0, 0), (1, 1), (1, 1)))
    out = jnp.zeros_like(x)
    for ky in range(3):
        for kx in range(3):
            out = out + weight[ky, kx] * xp[:, :, ky:ky + H, kx:kx + W]
    return out


if __name__ == "__main__":
    key = jax.random.PRNGKey(0)
    N, C, H, W = 2, 6, 16, 16   # forward indexes channels 0..5 -> C must be 6
    x = jax.random.normal(key, (N, C, H, W), dtype=jnp.float32)

    # Deterministic parameter init, exactly as in the module's __init__.
    weight = jnp.array([[0.0, -1.0, 0.0],
                        [-1.0, 4.0, -1.0],
                        [0.0, -1.0, 0.0]], dtype=jnp.float32)

    out = gaussian_blur(x, weight)
    out = jax.block_until_ready(out)

    ref = _reference(x, weight)
    assert out.shape == (N, C, H, W)
    assert jnp.allclose(out, ref, atol=1e-5, rtol=1e-5)
    print("KERNEL_OK")
</pallas_src>

<mosaic_0001>
module attributes {stable_mosaic.version = 11 : i64} {
  func.func @_blur_kernel(%arg0: i32, %arg1: i32, %arg2: memref<1x2x16x16xf32, #tpu.memory_space<vmem>>, %arg3: memref<3x3xf32, #tpu.memory_space<smem>>, %arg4: memref<1x2x16x16xf32, #tpu.memory_space<vmem>>) attributes {dimension_semantics = [#tpu.dimension_semantics<parallel>, #tpu.dimension_semantics<parallel>], iteration_bounds = array<i64: 2, 3>, scalar_prefetch = 0 : i64, scratch_operands = 0 : i64, tpu.core_type = #tpu.core_type<tc>, window_params = [{transform_indices = @transform_0, window_bounds = array<i64: 1, 2, 16, 16>}, {transform_indices = @transform_1, window_bounds = array<i64: 3, 3>}, {transform_indices = @transform_2, window_bounds = array<i64: 1, 2, 16, 16>}]} {
    %c0 = arith.constant 0 : index
    %c0_0 = arith.constant 0 : index
    %c0_1 = arith.constant 0 : index
    %c0_2 = arith.constant 0 : index
    %0 = vector.load %arg2[%c0, %c0_0, %c0_1, %c0_2] : memref<1x2x16x16xf32, #tpu.memory_space<vmem>>, vector<1x2x16x16xf32>
    %1 = vector.shape_cast %0 : vector<1x2x16x16xf32> to vector<2x16x16xf32>
    %2 = tpu.iota {dimensions = array<i32: 1>} : vector<2x16x16xi32>
    %3 = tpu.iota {dimensions = array<i32: 2>} : vector<2x16x16xi32>
    %c0_3 = arith.constant 0 : index
    %c0_4 = arith.constant 0 : index
    %4 = memref.load %arg3[%c0_3, %c0_4] : memref<3x3xf32, #tpu.memory_space<smem>>
    %c0_5 = arith.constant 0 : index
    %c1 = arith.constant 1 : index
    %5 = memref.load %arg3[%c0_5, %c1] : memref<3x3xf32, #tpu.memory_space<smem>>
    %c0_6 = arith.constant 0 : index
    %c2 = arith.constant 2 : index
    %6 = memref.load %arg3[%c0_6, %c2] : memref<3x3xf32, #tpu.memory_space<smem>>
    %c1_7 = arith.constant 1 : index
    %c0_8 = arith.constant 0 : index
    %7 = memref.load %arg3[%c1_7, %c0_8] : memref<3x3xf32, #tpu.memory_space<smem>>
    %c1_9 = arith.constant 1 : index
    %c1_10 = arith.constant 1 : index
    %8 = memref.load %arg3[%c1_9, %c1_10] : memref<3x3xf32, #tpu.memory_space<smem>>
    %c1_11 = arith.constant 1 : index
    %c2_12 = arith.constant 2 : index
    %9 = memref.load %arg3[%c1_11, %c2_12] : memref<3x3xf32, #tpu.memory_space<smem>>
    %c2_13 = arith.constant 2 : index
    %c0_14 = arith.constant 0 : index
    %10 = memref.load %arg3[%c2_13, %c0_14] : memref<3x3xf32, #tpu.memory_space<smem>>
    %c2_15 = arith.constant 2 : index
    %c1_16 = arith.constant 1 : index
    %11 = memref.load %arg3[%c2_15, %c1_16] : memref<3x3xf32, #tpu.memory_space<smem>>
    %c2_17 = arith.constant 2 : index
    %c2_18 = arith.constant 2 : index
    %12 = memref.load %arg3[%c2_17, %c2_18] : memref<3x3xf32, #tpu.memory_space<smem>>
    %c1_i32 = arith.constant 1 : i32
    %13 = vector.broadcast %c1_i32 : i32 to vector<2x16x16xi32>
    %14 = arith.cmpi sge, %2, %13 : vector<2x16x16xi32>
    %c1_i32_19 = arith.constant 1 : i32
    %15 = tpu.dynamic_rotate %1 by %c1_i32_19 dim 1 : vector<2x16x16xf32>, i32 -> vector<2x16x16xf32>
    %cst = arith.constant 0.000000e+00 : f32
    %16 = vector.broadcast %cst : f32 to vector<2x16x16xf32>
    %17 = arith.select %14, %15, %16 : vector<2x16x16xi1>, vector<2x16x16xf32>
    %c14_i32 = arith.constant 14 : i32
    %18 = vector.broadcast %c14_i32 : i32 to vector<2x16x16xi32>
    %19 = arith.cmpi sle, %2, %18 : vector<2x16x16xi32>
    %c15_i32 = arith.constant 15 : i32
    %20 = tpu.dynamic_rotate %1 by %c15_i32 dim 1 : vector<2x16x16xf32>, i32 -> vector<2x16x16xf32>
    %cst_20 = arith.constant 0.000000e+00 : f32
    %21 = vector.broadcast %cst_20 : f32 to vector<2x16x16xf32>
    %22 = arith.select %19, %20, %21 : vector<2x16x16xi1>, vector<2x16x16xf32>
    %23 = vector.broadcast %8 : f32 to vector<2x16x16xf32>
    %24 = arith.mulf %23, %1 : vector<2x16x16xf32>
    %c1_i32_21 = arith.constant 1 : i32
    %25 = tpu.dynamic_rotate %17 by %c1_i32_21 dim 2 : vector<2x16x16xf32>, i32 -> vector<2x16x16xf32>
    %c1_i32_22 = arith.constant 1 : i32
    %26 = vector.broadcast %c1_i32_22 : i32 to vector<2x16x16xi32>
    %27 = arith.cmpi sge, %3, %26 : vector<2x16x16xi32>
    %cst_23 = arith.constant 0.000000e+00 : f32
    %28 = vector.broadcast %cst_23 : f32 to vector<2x16x16xf32>
    %29 = arith.select %27, %25, %28 : vector<2x16x16xi1>, vector<2x16x16xf32>
    %30 = vector.broadcast %4 : f32 to vector<2x16x16xf32>
    %31 = arith.mulf %30, %29 : vector<2x16x16xf32>
    %32 = arith.addf %24, %31 : vector<2x16x16xf32>
    %33 = vector.broadcast %5 : f32 to vector<2x16x16xf32>
    %34 = arith.mulf %33, %17 : vector<2x16x16xf32>
    %35 = arith.addf %32, %34 : vector<2x16x16xf32>
    %c15_i32_24 = arith.constant 15 : i32
    %36 = tpu.dynamic_rotate %17 by %c15_i32_24 dim 2 : vector<2x16x16xf32>, i32 -> vector<2x16x16xf32>
    %c14_i32_25 = arith.constant 14 : i32
    %37 = vector.broadcast %c14_i32_25 : i32 to vector<2x16x16xi32>
    %38 = arith.cmpi sle, %3, %37 : vector<2x16x16xi32>
    %cst_26 = arith.constant 0.000000e+00 : f32
    %39 = vector.broadcast %cst_26 : f32 to vector<2x16x16xf32>
    %40 = arith.select %38, %36, %39 : vector<2x16x16xi1>, vector<2x16x16xf32>
    %41 = vector.broadcast %6 : f32 to vector<2x16x16xf32>
    %42 = arith.mulf %41, %40 : vector<2x16x16xf32>
    %43 = arith.addf %35, %42 : vector<2x16x16xf32>
    %c1_i32_27 = arith.constant 1 : i32
    %44 = tpu.dynamic_rotate %1 by %c1_i32_27 dim 2 : vector<2x16x16xf32>, i32 -> vector<2x16x16xf32>
    %c1_i32_28 = arith.constant 1 : i32
    %45 = vector.broadcast %c1_i32_28 : i32 to vector<2x16x16xi32>
    %46 = arith.cmpi sge, %3, %45 : vector<2x16x16xi32>
    %cst_29 = arith.constant 0.000000e+00 : f32
    %47 = vector.broadcast %cst_29 : f32 to vector<2x16x16xf32>
    %48 = arith.select %46, %44, %47 : vector<2x16x16xi1>, vector<2x16x16xf32>
    %49 = vector.broadcast %7 : f32 to vector<2x16x16xf32>
    %50 = arith.mulf %49, %48 : vector<2x16x16xf32>
    %51 = arith.addf %43, %50 : vector<2x16x16xf32>
    %c15_i32_30 = arith.constant 15 : i32
    %52 = tpu.dynamic_rotate %1 by %c15_i32_30 dim 2 : vector<2x16x16xf32>, i32 -> vector<2x16x16xf32>
    %c14_i32_31 = arith.constant 14 : i32
    %53 = vector.broadcast %c14_i32_31 : i32 to vector<2x16x16xi32>
    %54 = arith.cmpi sle, %3, %53 : vector<2x16x16xi32>
    %cst_32 = arith.constant 0.000000e+00 : f32
    %55 = vector.broadcast %cst_32 : f32 to vector<2x16x16xf32>
    %56 = arith.select %54, %52, %55 : vector<2x16x16xi1>, vector<2x16x16xf32>
    %57 = vector.broadcast %9 : f32 to vector<2x16x16xf32>
    %58 = arith.mulf %57, %56 : vector<2x16x16xf32>
    %59 = arith.addf %51, %58 : vector<2x16x16xf32>
    %c1_i32_33 = arith.constant 1 : i32
    %60 = tpu.dynamic_rotate %22 by %c1_i32_33 dim 2 : vector<2x16x16xf32>, i32 -> vector<2x16x16xf32>
    %c1_i32_34 = arith.constant 1 : i32
    %61 = vector.broadcast %c1_i32_34 : i32 to vector<2x16x16xi32>
    %62 = arith.cmpi sge, %3, %61 : vector<2x16x16xi32>
    %cst_35 = arith.constant 0.000000e+00 : f32
    %63 = vector.broadcast %cst_35 : f32 to vector<2x16x16xf32>
    %64 = arith.select %62, %60, %63 : vector<2x16x16xi1>, vector<2x16x16xf32>
    %65 = vector.broadcast %10 : f32 to vector<2x16x16xf32>
    %66 = arith.mulf %65, %64 : vector<2x16x16xf32>
    %67 = arith.addf %59, %66 : vector<2x16x16xf32>
    %68 = vector.broadcast %11 : f32 to vector<2x16x16xf32>
    %69 = arith.mulf %68, %22 : vector<2x16x16xf32>
    %70 = arith.addf %67, %69 : vector<2x16x16xf32>
    %c15_i32_36 = arith.constant 15 : i32
    %71 = tpu.dynamic_rotate %22 by %c15_i32_36 dim 2 : vector<2x16x16xf32>, i32 -> vector<2x16x16xf32>
    %c14_i32_37 = arith.constant 14 : i32
    %72 = vector.broadcast %c14_i32_37 : i32 to vector<2x16x16xi32>
    %73 = arith.cmpi sle, %3, %72 : vector<2x16x16xi32>
    %cst_38 = arith.constant 0.000000e+00 : f32
    %74 = vector.broadcast %cst_38 : f32 to vector<2x16x16xf32>
    %75 = arith.select %73, %71, %74 : vector<2x16x16xi1>, vector<2x16x16xf32>
    %76 = vector.broadcast %12 : f32 to vector<2x16x16xf32>
    %77 = arith.mulf %76, %75 : vector<2x16x16xf32>
    %78 = arith.addf %70, %77 : vector<2x16x16xf32>
    %c0_39 = arith.constant 0 : index
    %c0_40 = arith.constant 0 : index
    %c0_41 = arith.constant 0 : index
    %c0_42 = arith.constant 0 : index
    %79 = vector.load %arg4[%c0_39, %c0_40, %c0_41, %c0_42] : memref<1x2x16x16xf32, #tpu.memory_space<vmem>>, vector<1x2x16x16xf32>
    %80 = vector.shape_cast %79 : vector<1x2x16x16xf32> to vector<2x16x16xf32>
    %81 = vector.shape_cast %78 : vector<2x16x16xf32> to vector<1x2x16x16xf32>
    tpu.vector_store %arg4[%c0_39, %c0_40, %c0_41, %c0_42], %81 {strides = array<i32>} : memref<1x2x16x16xf32, #tpu.memory_space<vmem>>, vector<1x2x16x16xf32>,
    return
  }
  func.func @transform_0(%arg0: i32, %arg1: i32) -> (i32, i32, i32, i32) {
    %c0_i32 = arith.constant 0 : i32
    %c0_i32_0 = arith.constant 0 : i32
    %c0_i32_1 = arith.constant 0 : i32
    return %arg0, %arg1, %c0_i32, %c0_i32_0 : i32, i32, i32, i32
  }
  func.func @transform_1(%arg0: i32, %arg1: i32) -> (i32, i32) {
    %c0_i32 = arith.constant 0 : i32
    %c0_i32_0 = arith.constant 0 : i32
    %c0_i32_1 = arith.constant 0 : i32
    return %c0_i32, %c0_i32_0 : i32, i32
  }
  func.func @transform_2(%arg0: i32, %arg1: i32) -> (i32, i32, i32, i32) {
    %c0_i32 = arith.constant 0 : i32
    %c0_i32_0 = arith.constant 0 : i32
    %c0_i32_1 = arith.constant 0 : i32
    return %arg0, %arg1, %c0_i32, %c0_i32_0 : i32, i32, i32, i32
  }
}

</mosaic_0001>

<llo_original>
// kernel: tpu_custom_call.1
$region0: #{tpu_custom_call.1}
  #allocation0 [shape = 'u32[]', space=smem, size = 0x4, offset = 0x4, fixed_abs, tag = 'smem constant byte address 0x4 - core index']
  #allocation1 [shape = 'u32[144,128]{1,0:T(1,128)}', space=vmem, size = 0x12000, scoped, tag = 'internal scratch']
  %s0 = inlined_call_operand.hbm [shape: f32[2,6,16,16], index: 0, kind: input, shape index: {}]
  %s1 = inlined_call_operand.hbm [shape: f32[3,3], index: 1, kind: input, shape index: {}]
  %s2 = inlined_call_operand.hbm [shape: f32[2,6,16,16], index: 2, kind: output, shape index: {}]
  %s3 = sld [smem:[#allocation0]]
  $region49: #{tpu_custom_call.1} parent=0
    _
  %s5 = ssub.s32 1, %s3
  %s6 = scalar_select 0, %s5, %s3
  $region1: #{tpu_custom_call.1} parent=0
    #allocation2 [shape = 'u8[32768]{0}', space=vmem, size = 0x8000, scoped, tag = 'input window, operand 0']
    #allocation3 [shape = 's32[2]{0}', space=sflag, size = 0x8, scoped, tag = 'scoped memory for tpu_custom_call.1']
    #allocation4 [shape = 's32[2]{0}', space=sflag, size = 0x8, scoped, tag = 'scoped memory for tpu_custom_call.1']
    #allocation5 [shape = 's32[2]{0}', space=sflag, size = 0x8, scoped, tag = 'scoped memory for tpu_custom_call.1']
    #allocation6 [shape = 'u8[2048]{0}', space=smem, size = 0x800, scoped, tag = 'input window, operand 1, single buffered']
    #allocation7 [shape = 'u8[32768]{0}', space=vmem, size = 0x8000, scoped, tag = 'output window, operand 0']
    %7 = vsyncpa [#allocation3], 0
    %s8 = scalar_lea.sflag [#allocation3], 1
    %9 = vsyncpa %s8, 0
    %10 = vsyncpa [#allocation5], 0
    %11 = vsyncpa [#allocation4], 0
    %s12 = scalar_lea.sflag [#allocation4], 1
    %13 = vsyncpa %s12, 0
    loop: start=0, step=1, limit=8
    $region2: #{tpu_custom_call.1} parent=1 // loop_pre_header
      _
    $region3: #{tpu_custom_call.1} parent=1 // loop_header
      %s15 = sphi 0, %s19
      %p16 = scmp.ge.s32.totalorder %s15, 8
      %s22 = sphi 0, %s34
      %s23 = sphi 0, %s30
      %s24 = sphi 0, %s22
      %s25 = sphi 0, %s23
      %s26 = sphi 0, %s24
      %s27 = sphi 0, %s25
      %s39 = sphi 0, %s41
      %s42 = sphi 0, %s39
      %s43 = sphi 0, %s42
      %s59 = sphi 0, %s43
      %s63 = sphi 0, %s63
      %s65 = sphi 0, %s63
      %s66 = sphi 0, %s65
      %s80 = sphi 0, %s66
      %s88 = sphi 0, %s90
      %s91 = sphi 0, %s88
      %s92 = sphi 0, %s91
      %s108 = sphi 0, %s92
    $region4: #{tpu_custom_call.1} parent=1 // loop_header_branch
      %18 = sbr.rel (%p16) target = $region8
    $region5: #{tpu_custom_call.1} parent=1 // loop_body
      %s20 = ssub.s32 %s15, 1
      %s21 = ssub.s32 %s15, 2
      %s28 = sadd.s32 1, %s23
      %p29 = scmp.ge.s32.totalorder %s28, 3
      %s30 = scalar_select %p29, 0, %s28
      %s31 = sadd.s32 1, %s22
      %s32 = scalar_select %p29, %s31, %s22
      %p33 = scmp.ge.s32.totalorder %s32, 2
      %s34 = scalar_select %p33, 0, %s32
      %s35 = ssub.s32 %s22, %s34
      %s36 = ssub.s32 %s23, %s30
      %s37 = sor.u32 %s35, %s36
      %p38 = scmp.eq.s32.totalorder %s37, 0
      %s40 = sadd.s32 %s39, 1
      %s41 = scalar_select %p38, %s39, %s40
      %p44 = pneg %p38
      %p45 = scmp.eq.s32.totalorder %s15, 5
      %p46 = por %p44, %p45
      %p47 = scmp.ne.s32.totalorder %s39, %s42
      %p48 = scmp.eq.s32.totalorder %s15, 0
      %p49 = por %p47, %p48
      %p50 = scmp.ne.s32.totalorder %s39, %s42
      %p51 = scmp.eq.s32.totalorder %s20, 5
      %p52 = por %p50, %p51
      %p53 = scmp.ne.s32.totalorder %s42, %s43
      %p54 = scmp.eq.s32.totalorder %s20, 0
      %p55 = por %p53, %p54
      %p56 = scmp.ne.s32.totalorder %s42, %s43
      %p57 = scmp.eq.s32.totalorder %s21, 5
      %p58 = por %p56, %p57
      %p60 = scmp.ne.s32.totalorder %s43, %s59
      %p61 = scmp.eq.s32.totalorder %s21, 0
      %p62 = por %p60, %p61
      %s64 = sadd.s32 %s63, 1
      %p67 = scmp.eq.s32.totalorder %s15, 5
      %p68 = scmp.ne.s32.totalorder %s63, %s65
      %p69 = scmp.eq.s32.totalorder %s15, 0
      %p70 = por %p68, %p69
      %p71 = scmp.ne.s32.totalorder %s63, %s65
      %p72 = scmp.eq.s32.totalorder %s20, 5
      %p73 = por %p71, %p72
      %p74 = scmp.ne.s32.totalorder %s65, %s66
      %p75 = scmp.eq.s32.totalorder %s20, 0
      %p76 = por %p74, %p75
      %p77 = scmp.ne.s32.totalorder %s65, %s66
      %p78 = scmp.eq.s32.totalorder %s21, 5
      %p79 = por %p77, %p78
      %p81 = scmp.ne.s32.totalorder %s66, %s80
      %p82 = scmp.eq.s32.totalorder %s21, 0
      %p83 = por %p81, %p82
      %s84 = ssub.s32 %s22, %s34
      %s85 = ssub.s32 %s23, %s30
      %s86 = sor.u32 %s84, %s85
      %p87 = scmp.eq.s32.totalorder %s86, 0
      %s89 = sadd.s32 %s88, 1
      %s90 = scalar_select %p87, %s88, %s89
      %p93 = pneg %p87
      %p94 = scmp.eq.s32.totalorder %s15, 5
      %p95 = por %p93, %p94
      %p96 = scmp.ne.s32.totalorder %s88, %s91
      %p97 = scmp.eq.s32.totalorder %s15, 0
      %p98 = por %p96, %p97
      %p99 = scmp.ne.s32.totalorder %s88, %s91
      %p100 = scmp.eq.s32.totalorder %s20, 5
      %p101 = por %p99, %p100
      %p102 = scmp.ne.s32.totalorder %s91, %s92
      %p103 = scmp.eq.s32.totalorder %s20, 0
      %p104 = por %p102, %p103
      %p105 = scmp.ne.s32.totalorder %s91, %s92
      %p106 = scmp.eq.s32.totalorder %s21, 5
      %p107 = por %p105, %p106
      %p109 = scmp.ne.s32.totalorder %s92, %s108
      %p110 = scmp.eq.s32.totalorder %s21, 0
      %p111 = por %p109, %p110
      %p112 = scmp.le.s32.totalorder 1, %s15
      %p113 = scmp.lt.s32.totalorder %s15, 7
      %p114 = pnand %p112, %p113
      %p115 = pneg %p114
      // Predicated region
      $region9: #{tpu_custom_call.1} parent=5 // pred_check
        _
      $region10: #{tpu_custom_call.1} parent=5 // pred_check_branch
        %117 = sbr.rel (%p114) target = $region12
      $region11: #{tpu_custom_call.1} parent=5 // pred_region
        %s118 = ssub.s32 %s15, 1
        // Predicated region
        $region13: #{tpu_custom_call.1} parent=11 // pred_check
          %p119 = pneg %p76
        $region14: #{tpu_custom_call.1} parent=11 // pred_check_branch
          %121 = sbr.rel (%p119) target = $region16
        $region15: #{tpu_custom_call.1} parent=11 // pred_region
          %s123 = ssub.s32 64, 64
          %124 = vsyncadd [#allocation5], %s123
          %127 = dma.hbm_to_smem %s1, 64, [#allocation6], [#allocation5]
        $region16: #{tpu_custom_call.1} parent=11 // pred_fallthru
          _
      $region12: #{tpu_custom_call.1} parent=5 // pred_fallthru
        _
      %p128 = scmp.lt.s32.totalorder %s15, 6
      // Predicated region
      $region17: #{tpu_custom_call.1} parent=5 // pred_check
        %p129 = pneg %p128
      $region18: #{tpu_custom_call.1} parent=5 // pred_check_branch
        %131 = sbr.rel (%p129) target = $region20
      $region19: #{tpu_custom_call.1} parent=5 // pred_region
        // Predicated region
        $region21: #{tpu_custom_call.1} parent=19 // pred_check
          %p132 = pneg %p49
        $region22: #{tpu_custom_call.1} parent=19 // pred_check_branch
          %134 = sbr.rel (%p132) target = $region24
        $region23: #{tpu_custom_call.1} parent=19 // pred_region
          %s135 = sand.u32 %s39, 1
          %s136 = scalar_lea.sflag [#allocation3], %s135
          %s137 = sand.u32 %s39, 1
          %s138 = smul.addr %s137, 32
          %s139 = scalar_lea.vmem [#allocation2], %s138
          %s140 = smul.u32 2, %s23
          %s142 = ssub.s32 512, 512
          %143 = vsyncadd %s136, %s142
          %s144 = smul.addr %s140, 2
          %s145 = smul.addr %s22, 12
          %s146 = sadd.s32 %s144, %s145
          %s147 = smul.addr %s146, 128
          %s148 = scalar_lea.hbm %s0, %s147
          %s149 = sshll.u32 %s139, 4
          %s150 = int_to_ptr.vmem [resolvable:$true] %s149
          %155 = dma.hbm_to_vmem [thread:$0]  %s148, 512, %s150, %s136, 128, 128, 8
        $region24: #{tpu_custom_call.1} parent=19 // pred_fallthru
          _
      $region20: #{tpu_custom_call.1} parent=5 // pred_fallthru
        _
      %p156 = scmp.le.s32.totalorder 1, %s15
      %p157 = scmp.lt.s32.totalorder %s15, 7
      %p158 = pnand %p156, %p157
      %p159 = pneg %p158
      // Predicated region
      $region25: #{tpu_custom_call.1} parent=5 // pred_check
        _
      $region26: #{tpu_custom_call.1} parent=5 // pred_check_branch
        %161 = sbr.rel (%p158) target = $region28
      $region27: #{tpu_custom_call.1} parent=5 // pred_region
        %s162 = ssub.s32 %s15, 1
        %s163 = sand.u32 %s42, 1
        %s164 = scalar_lea.sflag [#allocation3], %s163
        %s165 = sand.u32 %s42, 1
        %s166 = smul.addr %s165, 32
        %s167 = scalar_lea.vmem [#allocation2], %s166
        // Predicated region
        $region29: #{tpu_custom_call.1} parent=27 // pred_check
          %p168 = pneg %p55
        $region30: #{tpu_custom_call.1} parent=27 // pred_check_branch
          %170 = sbr.rel (%p168) target = $region32
        $region31: #{tpu_custom_call.1} parent=27 // pred_region
          %171 = dma.done %s164, 512
        $region32: #{tpu_custom_call.1} parent=27 // pred_fallthru
          _
        // Predicated region
        $region33: #{tpu_custom_call.1} parent=27 // pred_check
          %p172 = pneg %p76
        $region34: #{tpu_custom_call.1} parent=27 // pred_check_branch
          %174 = sbr.rel (%p172) target = $region36
        $region35: #{tpu_custom_call.1} parent=27 // pred_region
          %175 = dma.done [#allocation5], 64
        $region36: #{tpu_custom_call.1} parent=27 // pred_fallthru
          _
        %176 = sfence
        %s177 = sand.u32 %s42, 1
        %s178 = scalar_lea.sflag [#allocation3], %s177
        %s179 = sand.u32 %s42, 1
        %s180 = smul.addr %s179, 32
        %s181 = scalar_lea.vmem [#allocation2], %s180
        %p182 = pneg %p55
        %p183 = pneg %p52
        %p184 = pneg %p76
        %p185 = pneg %p73
        %p186 = pneg %p104
        %p187 = pneg %p101
        %s188 = sand.u32 %s91, 1
        %s189 = scalar_lea.sflag [#allocation4], %s188
        %s190 = sand.u32 %s91, 1
        %s191 = smul.addr %s190, 32
        %s192 = scalar_lea.vmem [#allocation7], %s191
        %s193 = smul.u32 2, %s25
        %s194 = smul.u32 2, %s25
        %v195 = vld [vmem:[%s167] sm:$0xff]
        %v196 = vld [vmem:[%s167 + $0x8] sm:$0xff]
        %v197 = vld [vmem:[%s167 + $0x10] sm:$0xff]
        %v198 = vld [vmem:[%s167 + $0x18] sm:$0xff]
        %v199 = vlaneseq
        %v200 = vshrl.u32 %v199, 7
        %v201 = vadd.s32 %v200, 8
        %v202 = vlaneseq
        %v203 = vand.u32 %v202, 127
        %s204 = sld [smem:[#allocation6]]
        %s205 = sld [smem:[#allocation6 + $0x1]]
        %s206 = sld [smem:[#allocation6 + $0x2]]
        %s207 = sld [smem:[#allocation6 + $0x80]]
        %s208 = sld [smem:[#allocation6 + $0x81]]
        %s209 = sld [smem:[#allocation6 + $0x82]]
        %s210 = sld [smem:[#allocation6 + $0x100]]
        %s211 = sld [smem:[#allocation6 + $0x101]]
        %s212 = sld [smem:[#allocation6 + $0x102]]
        %vm213 = vcmp.ge.s32.totalorder %v200, 1
        %vm214 = vcmp.ge.s32.totalorder %v201, 1
        %v215 = vrot.slane %v195, 7
        %v216 = vrot.slane %v197, 7
        %v217 = vrot.slane %v196, 7
        %v218 = vrot.slane %v198, 7
        %vm219 = vcmp.lt.s32.totalorder %v200, 1
        %v220 = vsel %vm219, %v215, %v217
        %v221 = vsel %vm219, %v216, %v218
        %v222 = vsel %vm219, %v217, %v215
        %v223 = vsel %vm219, %v218, %v216
        %v224 = vsel %vm213, %v222, 0.0
        %v225 = vsel %vm214, %v220, 0.0
        %v226 = vsel %vm213, %v223, 0.0
        %v227 = vsel %vm214, %v221, 0.0
        %vm228 = vcmp.le.s32.totalorder %v200, 14
        %vm229 = vcmp.le.s32.totalorder %v201, 14
        %v230 = vrot.slane %v195, 1
        %v231 = vrot.slane %v197, 1
        %v232 = vrot.slane %v196, 1
        %v233 = vrot.slane %v198, 1
        %vm234 = vcmp.lt.s32.totalorder %v200, 7
        %v235 = vsel %vm234, %v230, %v232
        %v236 = vsel %vm234, %v231, %v233
        %v237 = vsel %vm234, %v232, %v230
        %v238 = vsel %vm234, %v233, %v231
        %v239 = vsel %vm228, %v235, 0.0
        %v240 = vsel %vm229, %v237, 0.0
        %v241 = vsel %vm228, %v236, 0.0
        %v242 = vsel %vm229, %v238, 0.0
        %v243 = vstv %s208
        %v244 = vmul.f32 %v243, %v195
        %v245 = vmul.f32 %v243, %v196
        %v246 = vmul.f32 %v243, %v197
        %v247 = vmul.f32 %v243, %v198
        %vm248 = vcmask 1047680
        %249 = vrot.lane.b32.xlu0 %v224, 16
        %v250 = vpop.permute.xlu0 %249
        %v251 = vsel %vm248, %v250, %v224
        %252 = vrot.lane.b32.xlu0 %v225, 16
        %v253 = vpop.permute.xlu0 %252
        %v254 = vsel %vm248, %v253, %v225
        %255 = vrot.lane.b32.xlu0 %v226, 16
        %v256 = vpop.permute.xlu0 %255
        %v257 = vsel %vm248, %v256, %v226
        %258 = vrot.lane.b32.xlu0 %v227, 16
        %v259 = vpop.permute.xlu0 %258
        %v260 = vsel %vm248, %v259, %v227
        %261 = vrot.lane.b32.xlu0 %v251, 16
        %v262 = vpop.permute.xlu0 %261
        %263 = vrot.lane.b32.xlu0 %v254, 16
        %v264 = vpop.permute.xlu0 %263
        %265 = vrot.lane.b32.xlu0 %v257, 16
        %v266 = vpop.permute.xlu0 %265
        %267 = vrot.lane.b32.xlu0 %v260, 16
        %v268 = vpop.permute.xlu0 %267
        %v269 = vsel %vm248, %v262, %v224
        %v270 = vsel %vm248, %v264, %v225
        %v271 = vsel %vm248, %v266, %v226
        %v272 = vsel %vm248, %v268, %v227
        %vm273 = vcmp.ge.s32.totalorder %v203, 1
        %278 = vrot.lane.b32.xlu0 %v269, 113
        %v279 = vpop.permute.xlu0 %278
        %280 = vrot.lane.b32.xlu0 %v270, 113
        %v281 = vpop.permute.xlu0 %280
        %282 = vrot.lane.b32.xlu0 %v271, 113
        %v283 = vpop.permute.xlu0 %282
        %284 = vrot.lane.b32.xlu0 %v272, 113
        %v285 = vpop.permute.xlu0 %284
        %v290 = vsel %vm273, %v279, 0.0
        %v291 = vsel %vm273, %v281, 0.0
        %v292 = vsel %vm273, %v283, 0.0
        %v293 = vsel %vm273, %v285, 0.0
        %v294 = vstv %s204
        %v295 = vmul.f32 %v294, %v290
        %v296 = vmul.f32 %v294, %v291
        %v297 = vmul.f32 %v294, %v292
        %v298 = vmul.f32 %v294, %v293
        %v299 = vadd.f32 %v244, %v295
        %v300 = vadd.f32 %v245, %v296
        %v301 = vadd.f32 %v246, %v297
        %v302 = vadd.f32 %v247, %v298
        %v303 = vstv %s205
        %v304 = vmul.f32 %v303, %v224
        %v305 = vmul.f32 %v303, %v225
        %v306 = vmul.f32 %v303, %v226
        %v307 = vmul.f32 %v303, %v227
        %v308 = vadd.f32 %v299, %v304
        %v309 = vadd.f32 %v300, %v305
        %v310 = vadd.f32 %v301, %v306
        %v311 = vadd.f32 %v302, %v307
        %vm312 = vcmp.le.s32.totalorder %v203, 14
        %313 = vrot.lane.b32.xlu0 %v269, 127
        %v314 = vpop.permute.xlu0 %313
        %315 = vrot.lane.b32.xlu0 %v270, 127
        %v316 = vpop.permute.xlu0 %315
        %317 = vrot.lane.b32.xlu0 %v271, 127
        %v318 = vpop.permute.xlu0 %317
        %319 = vrot.lane.b32.xlu0 %v272, 127
        %v320 = vpop.permute.xlu0 %319
        %v325 = vsel %vm312, %v314, 0.0
        %v326 = vsel %vm312, %v316, 0.0
        %v327 = vsel %vm312, %v318, 0.0
        %v328 = vsel %vm312, %v320, 0.0
        %v329 = vstv %s206
        %v330 = vmul.f32 %v329, %v325
        %v331 = vmul.f32 %v329, %v326
        %v332 = vmul.f32 %v329, %v327
        %v333 = vmul.f32 %v329, %v328
        %v334 = vadd.f32 %v308, %v330
        %v335 = vadd.f32 %v309, %v331
        %v336 = vadd.f32 %v310, %v332
        %v337 = vadd.f32 %v311, %v333
        %338 = vrot.lane.b32.xlu0 %v195, 16
        %v339 = vpop.permute.xlu0 %338
        %v340 = vsel %vm248, %v339, %v195
        %341 = vrot.lane.b32.xlu0 %v196, 16
        %v342 = vpop.permute.xlu0 %341
        %v343 = vsel %vm248, %v342, %v196
        %344 = vrot.lane.b32.xlu0 %v197, 16
        %v345 = vpop.permute.xlu0 %344
        %v346 = vsel %vm248, %v345, %v197
        %347 = vrot.lane.b32.xlu0 %v198, 16
        %v348 = vpop.permute.xlu0 %347
        %v349 = vsel %vm248, %v348, %v198
        %350 = vrot.lane.b32.xlu0 %v340, 16
        %v351 = vpop.permute.xlu0 %350
        %352 = vrot.lane.b32.xlu0 %v343, 16
        %v353 = vpop.permute.xlu0 %352
        %354 = vrot.lane.b32.xlu0 %v346, 16
        %v355 = vpop.permute.xlu0 %354
        %356 = vrot.lane.b32.xlu0 %v349, 16
        %v357 = vpop.permute.xlu0 %356
        %v358 = vsel %vm248, %v351, %v195
        %v359 = vsel %vm248, %v353, %v196
        %v360 = vsel %vm248, %v355, %v197
        %v361 = vsel %vm248, %v357, %v198
        %366 = vrot.lane.b32.xlu0 %v358, 113
        %v367 = vpop.permute.xlu0 %366
        %368 = vrot.lane.b32.xlu0 %v359, 113
        %v369 = vpop.permute.xlu0 %368
        %370 = vrot.lane.b32.xlu0 %v360, 113
        %v371 = vpop.permute.xlu0 %370
        %372 = vrot.lane.b32.xlu0 %v361, 113
        %v373 = vpop.permute.xlu0 %372
        %v378 = vsel %vm273, %v367, 0.0
        %v379 = vsel %vm273, %v369, 0.0
        %v380 = vsel %vm273, %v371, 0.0
        %v381 = vsel %vm273, %v373, 0.0
        %v382 = vstv %s207
        %v383 = vmul.f32 %v382, %v378
        %v384 = vmul.f32 %v382, %v379
        %v385 = vmul.f32 %v382, %v380
        %v386 = vmul.f32 %v382, %v381
        %v387 = vadd.f32 %v334, %v383
        %v388 = vadd.f32 %v335, %v384
        %v389 = vadd.f32 %v336, %v385
        %v390 = vadd.f32 %v337, %v386
        %391 = vrot.lane.b32.xlu0 %v358, 127
        %v392 = vpop.permute.xlu0 %391
        %393 = vrot.lane.b32.xlu0 %v359, 127
        %v394 = vpop.permute.xlu0 %393
        %395 = vrot.lane.b32.xlu0 %v360, 127
        %v396 = vpop.permute.xlu0 %395
        %397 = vrot.lane.b32.xlu0 %v361, 127
        %v398 = vpop.permute.xlu0 %397
        %v403 = vsel %vm312, %v392, 0.0
        %v404 = vsel %vm312, %v394, 0.0
        %v405 = vsel %vm312, %v396, 0.0
        %v406 = vsel %vm312, %v398, 0.0
        %v407 = vstv %s209
        %v408 = vmul.f32 %v407, %v403
        %v409 = vmul.f32 %v407, %v404
        %v410 = vmul.f32 %v407, %v405
        %v411 = vmul.f32 %v407, %v406
        %v412 = vadd.f32 %v387, %v408
        %v413 = vadd.f32 %v388, %v409
        %v414 = vadd.f32 %v389, %v410
        %v415 = vadd.f32 %v390, %v411
        %416 = vrot.lane.b32.xlu0 %v239, 16
        %v417 = vpop.permute.xlu0 %416
        %v418 = vsel %vm248, %v417, %v239
        %419 = vrot.lane.b32.xlu0 %v240, 16
        %v420 = vpop.permute.xlu0 %419
        %v421 = vsel %vm248, %v420, %v240
        %422 = vrot.lane.b32.xlu0 %v241, 16
        %v423 = vpop.permute.xlu0 %422
        %v424 = vsel %vm248, %v423, %v241
        %425 = vrot.lane.b32.xlu0 %v242, 16
        %v426 = vpop.permute.xlu0 %425
        %v427 = vsel %vm248, %v426, %v242
        %428 = vrot.lane.b32.xlu0 %v418, 16
        %v429 = vpop.permute.xlu0 %428
        %430 = vrot.lane.b32.xlu0 %v421, 16
        %v431 = vpop.permute.xlu0 %430
        %432 = vrot.lane.b32.xlu0 %v424, 16
        %v433 = vpop.permute.xlu0 %432
        %434 = vrot.lane.b32.xlu0 %v427, 16
        %v435 = vpop.permute.xlu0 %434
        %v436 = vsel %vm248, %v429, %v239
        %v437 = vsel %vm248, %v431, %v240
        %v438 = vsel %vm248, %v433, %v241
        %v439 = vsel %vm248, %v435, %v242
        %444 = vrot.lane.b32.xlu0 %v436, 113
        %v445 = vpop.permute.xlu0 %444
        %446 = vrot.lane.b32.xlu0 %v437, 113
        %v447 = vpop.permute.xlu0 %446
        %448 = vrot.lane.b32.xlu0 %v438, 113
        %v449 = vpop.permute.xlu0 %448
        %450 = vrot.lane.b32.xlu0 %v439, 113
        %v451 = vpop.permute.xlu0 %450
        %v456 = vsel %vm273, %v445, 0.0
        %v457 = vsel %vm273, %v447, 0.0
        %v458 = vsel %vm273, %v449, 0.0
        %v459 = vsel %vm273, %v451, 0.0
        %v460 = vstv %s210
        %v461 = vmul.f32 %v460, %v456
        %v462 = vmul.f32 %v460, %v457
        %v463 = vmul.f32 %v460, %v458
        %v464 = vmul.f32 %v460, %v459
        %v465 = vadd.f32 %v412, %v461
        %v466 = vadd.f32 %v413, %v462
        %v467 = vadd.f32 %v414, %v463
        %v468 = vadd.f32 %v415, %v464
        %v469 = vstv %s211
        %v470 = vmul.f32 %v469, %v239
        %v471 = vmul.f32 %v469, %v240
        %v472 = vmul.f32 %v469, %v241
        %v473 = vmul.f32 %v469, %v242
        %v474 = vadd.f32 %v465, %v470
        %v475 = vadd.f32 %v466, %v471
        %v476 = vadd.f32 %v467, %v472
        %v477 = vadd.f32 %v468, %v473
        %478 = vrot.lane.b32.xlu0 %v436, 127
        %v479 = vpop.permute.xlu0 %478
        %480 = vrot.lane.b32.xlu0 %v437, 127
        %v481 = vpop.permute.xlu0 %480
        %482 = vrot.lane.b32.xlu0 %v438, 127
        %v483 = vpop.permute.xlu0 %482
        %484 = vrot.lane.b32.xlu0 %v439, 127
        %v485 = vpop.permute.xlu0 %484
        %v490 = vsel %vm312, %v479, 0.0
        %v491 = vsel %vm312, %v481, 0.0
        %v492 = vsel %vm312, %v483, 0.0
        %v493 = vsel %vm312, %v485, 0.0
        %v494 = vstv %s212
        %v495 = vmul.f32 %v494, %v490
        %v496 = vmul.f32 %v494, %v491
        %v497 = vmul.f32 %v494, %v492
        %v498 = vmul.f32 %v494, %v493
        %v499 = vadd.f32 %v474, %v495
        %v500 = vadd.f32 %v475, %v496
        %v501 = vadd.f32 %v476, %v497
        %v502 = vadd.f32 %v477, %v498
        %vm503 = vcmask 130048
        %504 = vst.msk [vmem:[%s192] sm:$0xff] %vm503, %v499
        %505 = vst.msk [vmem:[%s192 + $0x8] sm:$0xff] %vm503, %v500
        %506 = vst.msk [vmem:[%s192 + $0x10] sm:$0xff] %vm503, %v501
        %507 = vst.msk [vmem:[%s192 + $0x18] sm:$0xff] %vm503, %v502
        %s508 = sand.u32 %s91, 1
        %s509 = scalar_lea.sflag [#allocation4], %s508
        %s510 = sand.u32 %s91, 1
        %s511 = smul.addr %s510, 32
        %s512 = scalar_lea.vmem [#allocation7], %s511
        // Predicated region
        $region37: #{tpu_custom_call.1} parent=27 // pred_check
          %p513 = pneg %p101
        $region38: #{tpu_custom_call.1} parent=27 // pred_check_branch
          %515 = sbr.rel (%p513) target = $region40
        $region39: #{tpu_custom_call.1} parent=27 // pred_region
          %s516 = smul.u32 2, %s25
          %s518 = ssub.s32 512, 512
          %519 = vsyncadd %s509, %s518
          %s520 = smul.addr %s516, 2
          %s521 = smul.addr %s24, 12
          %s522 = sadd.s32 %s520, %s521
          %s523 = smul.addr %s522, 128
          %s524 = scalar_lea.hbm %s2, %s523
          %s525 = sshll.u32 %s512, 4
          %s526 = int_to_ptr.vmem [resolvable:$true] %s525
          %531 = dma.vmem_to_hbm [thread:$0]  %s526, 512, %s524, %s509, 128, 128, 8
        $region40: #{tpu_custom_call.1} parent=27 // pred_fallthru
          _
      $region28: #{tpu_custom_call.1} parent=5 // pred_fallthru
        _
      %p532 = scmp.le.s32.totalorder 2, %s15
      // Predicated region
      $region41: #{tpu_custom_call.1} parent=5 // pred_check
        %p533 = pneg %p532
      $region42: #{tpu_custom_call.1} parent=5 // pred_check_branch
        %535 = sbr.rel (%p533) target = $region44
      $region43: #{tpu_custom_call.1} parent=5 // pred_region
        %s536 = ssub.s32 %s15, 2
        // Predicated region
        $region45: #{tpu_custom_call.1} parent=43 // pred_check
          %p537 = pneg %p107
        $region46: #{tpu_custom_call.1} parent=43 // pred_check_branch
          %539 = sbr.rel (%p537) target = $region48
        $region47: #{tpu_custom_call.1} parent=43 // pred_region
          %s540 = sand.u32 %s92, 1
          %s541 = scalar_lea.sflag [#allocation4], %s540
          %s542 = sand.u32 %s92, 1
          %s543 = smul.addr %s542, 32
          %s544 = scalar_lea.vmem [#allocation7], %s543
          %545 = dma.done %s541, 512
        $region48: #{tpu_custom_call.1} parent=43 // pred_fallthru
          _
      $region44: #{tpu_custom_call.1} parent=5 // pred_fallthru
        _
    $region6: #{tpu_custom_call.1} parent=1 // loop_footer
      %s19 = sadd.s32 1, %s15
    $region7: #{tpu_custom_call.1} parent=1 // loop_footer_branch
      %14 = sbr.rel target = $region3
    $region8: #{tpu_custom_call.1} parent=1 // loop_exit
      _
    %546 = vsyncpa [#allocation3], 1
    %s547 = scalar_lea.sflag [#allocation3], 1
    %548 = vsyncpa %s547, 1
    %549 = vsyncpa [#allocation4], 1
    %s550 = scalar_lea.sflag [#allocation4], 1
    %551 = vsyncpa %s550, 1
    %552 = vsyncpa [#allocation5], 1
    %s553 = scalar_lea.sflag [#allocation5], 1
    %554 = vsyncpa %s553, 1

</llo_original>
